<compile_context>
chip_gen: v7x
topology: tpu7x:2x2x1
jax: 0.10.0
libtpu: 0.0.40
codegen_flags: <defaults>
</compile_context>

<pallas_src>
import functools

import jax
import jax.numpy as jnp
from jax.experimental import pallas as pl
from jax.experimental.pallas import tpu as pltpu


def _round_up(x, m):
    return ((x + m - 1) // m) * m


# ---------------------------------------------------------------------------
# Fused kernel
#   grid = (Bpad // bb, Ppad // tp)
#   step (i, p): stream a (bb, tp, K) tile of bf16 patch rows and fold it into
#                a (bb, 8, K) f32 partial-sum accumulator with aligned 8-row
#                chunk adds (VPU only — no MXU / no XLU work per step).
#   finalize (last p): mean = sum / P ; mean @ Wp + bp ; (. ) @ Wh + eff_bias.
# ---------------------------------------------------------------------------
def _fused_vit_head_kernel(patches_ref, w_patch_ref, b_patch_ref,
                           w_head_ref, bias_ref, o_ref, acc_ref,
                           *, inv_num_patches):
    p_idx = pl.program_id(1)

    @pl.when(p_idx == 0)
    def _init():
        acc_ref[...] = jnp.zeros_like(acc_ref)

    # Mean-first: only SUM the raw patch rows here (the mean commutes with the
    # linear patch embed).  Aligned 8-sublane chunks -> plain vreg adds.
    tp = patches_ref.shape[1]
    part = patches_ref[:, 0:8, :].astype(jnp.float32)            # (bb, 8, K)
    for r in range(1, tp // 8):
        part = part + patches_ref[:, r * 8:(r + 1) * 8, :].astype(jnp.float32)
    acc_ref[...] += part

    @pl.when(p_idx == pl.num_programs(1) - 1)
    def _finalize():
        # Collapse the 8-way partials once; zero-padded patch rows contribute
        # nothing and inv_num_patches uses the true P.
        raw_mean = jnp.sum(acc_ref[...], axis=1) * inv_num_patches  # (bb, K)
        # mean(X) @ Wp + bp  ==  mean(X @ Wp + bp)
        mean_emb = (jnp.dot(raw_mean.astype(jnp.bfloat16), w_patch_ref[...],
                            preferred_element_type=jnp.float32)
                    + b_patch_ref[...])                             # (bb, D)
        # eff_bias already contains cls_token @ W_head[:D] + b_head.
        out = (jnp.dot(mean_emb.astype(jnp.bfloat16), w_head_ref[...],
                       preferred_element_type=jnp.float32)
               + bias_ref[...])                                     # (bb, Npad)
        o_ref[...] = out


def _pick_patch_tile(num_patches, row_bytes, max_rows=512,
                     max_tile_bytes=8 << 20):
    """Rows per patch tile: a multiple of 8, as large as the caps allow."""
    tp = min(max_rows, max(8, max_tile_bytes // max(row_bytes, 1)))
    tp = max(8, (tp // 8) * 8)
    return min(tp, _round_up(num_patches, 8))


# ---------------------------------------------------------------------------
# Wrapper (synthetic backbone patch-embed + learned cls token + fused head)
# ---------------------------------------------------------------------------
def patchify_nchw(x, patch):
    # (B, C, H, W) -> (B, P, C*patch*patch), matching Conv2d weight flatten
    # order (C, kh, kw).
    b, c, h, w = x.shape
    x = x.reshape(b, c, h // patch, patch, w // patch, patch)
    x = jnp.transpose(x, (0, 2, 4, 1, 3, 5))        # (B, Hp, Wp, C, ph, pw)
    return x.reshape(b, (h // patch) * (w // patch), c * patch * patch)


def linear_head_vit_forward(x, params, *, patch,
                            patch_tokens_only=False, class_token_only=False):
    batch = x.shape[0]
    k_in, d = params["w_patch"].shape
    w_head = params["w_head"].astype(jnp.float32)
    b_head = params["b_head"].reshape(1, -1).astype(jnp.float32)
    num_classes = w_head.shape[1]
    cls_vec = params["cls_token"].reshape(1, -1).astype(jnp.float32)

    # --- trace-time mode specialization (no explicit-zero weight paths) ----
    if class_token_only:
        # Output is independent of the image (cls token is batch-broadcast):
        # a single tiny XLA GEMM; the patch stream is skipped entirely.
        out = cls_vec @ w_head + b_head                    # (1, N)
        return jnp.broadcast_to(out, (batch, num_classes))

    if patch_tokens_only:
        w_pat = w_head                                     # (D, N)
        eff_bias = b_head                                  # (1, N)
    else:
        # concat([cls, mean]) @ W == cls @ W[:D] + mean @ W[D:]; cls is
        # identical per image, so fold cls @ W[:D] + b_head into one bias.
        w_pat = w_head[d:]                                 # (D, N)
        eff_bias = cls_vec @ w_head[:d] + b_head           # (1, N)

    n_pad = _round_up(num_classes, 128)                    # lane-dense output
    w_pat = jnp.pad(w_pat, ((0, 0), (0, n_pad - num_classes))
                    ).astype(jnp.bfloat16)
    eff_bias = jnp.pad(eff_bias, ((0, 0), (0, n_pad - num_classes)))

    # --- synthetic backbone.forward_features inputs ---
    patches = patchify_nchw(x, patch).astype(jnp.bfloat16)  # (B, P, K)
    num_patches = patches.shape[1]
    w_patch = params["w_patch"].astype(jnp.bfloat16)         # (K, D)
    b_patch = params["b_patch"].reshape(1, d).astype(jnp.float32)

    # --- batch / patch-axis blocking ---
    bb = 8 if batch >= 8 else batch
    b_pad = _round_up(batch, bb)
    tp = _pick_patch_tile(num_patches, row_bytes=bb * k_in * 2)
    p_pad = _round_up(num_patches, tp)
    if (b_pad, p_pad) != (batch, num_patches):
        # Zero patch rows are exact for the SUM (divided by the true P);
        # padded batch rows are sliced away below.
        patches = jnp.pad(patches, ((0, b_pad - batch),
                                    (0, p_pad - num_patches), (0, 0)))

    grid = (b_pad // bb, p_pad // tp)
    kernel = functools.partial(_fused_vit_head_kernel,
                               inv_num_patches=1.0 / num_patches)

    out_padded = pl.pallas_call(
        kernel,
        out_shape=jax.ShapeDtypeStruct((b_pad, n_pad), jnp.float32),
        grid=grid,
        in_specs=[
            pl.BlockSpec((bb, tp, k_in), lambda i, p: (i, p, 0)),  # patches
            pl.BlockSpec((k_in, d), lambda i, p: (0, 0)),          # w_patch
            pl.BlockSpec((1, d), lambda i, p: (0, 0)),             # b_patch
            pl.BlockSpec((d, n_pad), lambda i, p: (0, 0)),         # W_head[D:]
            pl.BlockSpec((1, n_pad), lambda i, p: (0, 0)),         # eff_bias
        ],
        out_specs=pl.BlockSpec((bb, n_pad), lambda i, p: (i, 0)),
        scratch_shapes=[pltpu.VMEM((bb, 8, k_in), jnp.float32)],
        compiler_params=pltpu.CompilerParams(
            dimension_semantics=("parallel", "arbitrary"),
            vmem_limit_bytes=32 * 1024 * 1024),
    )(patches, w_patch, b_patch, w_pat, eff_bias)

    return out_padded[:batch, :num_classes]


# ---------------------------------------------------------------------------
# Pure-JAX f32 reference (mirrors the PyTorch module's forward)
# ---------------------------------------------------------------------------
def _reference_forward(x, params, *, patch,
                       patch_tokens_only=False, class_token_only=False):
    b = x.shape[0]
    d = params["w_patch"].shape[1]
    patches = patchify_nchw(x, patch)
    p = patches.shape[1]
    emb = (patches.reshape(b * p, -1) @ params["w_patch"]
           + params["b_patch"]).reshape(b, p, d)
    cls = jnp.broadcast_to(params["cls_token"], (b, 1, d))
    tokens = jnp.concatenate([cls, emb], axis=1)
    cls_tok = tokens[:, 0, :]
    patch_mean = tokens[:, 1:, :].mean(axis=1)
    if patch_tokens_only:
        feat = patch_mean
    elif class_token_only:
        feat = cls_tok
    else:
        feat = jnp.concatenate([cls_tok, patch_mean], axis=1)
    return feat @ params["w_head"] + params["b_head"]


if __name__ == "__main__":
    key = jax.random.PRNGKey(0)
    k_x, k_wp, k_bp, k_cls, k_wh, k_wh2, k_bh = jax.random.split(key, 7)

    # Small, shape-consistent config: batch=2, channels=4, spatial=16,
    # patch=4 -> 16 patch tokens, embed_dim=32, num_classes=10.
    B, C, H, W = 2, 4, 16, 16
    PATCH = 4
    D = 32
    NUM_CLASSES = 10

    x = jax.random.normal(k_x, (B, C, H, W), dtype=jnp.float32)

    base = {
        "w_patch": 0.05 * jax.random.normal(
            k_wp, (C * PATCH * PATCH, D), dtype=jnp.float32),
        "b_patch": 0.05 * jax.random.normal(k_bp, (1, D), dtype=jnp.float32),
        "cls_token": 0.05 * jax.random.normal(
            k_cls, (1, 1, D), dtype=jnp.float32),
        "b_head": 0.05 * jax.random.normal(
            k_bh, (1, NUM_CLASSES), dtype=jnp.float32),
    }
    # default path: in_features = 2*D (concat of cls + mean patch tokens)
    w_head_full = 0.05 * jax.random.normal(
        k_wh, (2 * D, NUM_CLASSES), dtype=jnp.float32)
    # single-token paths: in_features = D
    w_head_half = 0.05 * jax.random.normal(
        k_wh2, (D, NUM_CLASSES), dtype=jnp.float32)

    configs = [
        (dict(base, w_head=w_head_full), {}),
        (dict(base, w_head=w_head_half), {"patch_tokens_only": True}),
        (dict(base, w_head=w_head_half), {"class_token_only": True}),
    ]

    for params, flags in configs:
        out = linear_head_vit_forward(x, params, patch=PATCH, **flags)
        out = jax.block_until_ready(out)
        ref = _reference_forward(x, params, patch=PATCH, **flags)
        assert out.shape == (B, NUM_CLASSES)
        # bf16 MXU inputs with f32 accumulation: loose-but-tight-enough check.
        assert jnp.allclose(out, ref, atol=1e-2, rtol=1e-2), (
            float(jnp.max(jnp.abs(out - ref))))

    print("KERNEL_OK")
</pallas_src>

<mosaic_0001>
module attributes {stable_mosaic.version = 11 : i64} {
  func.func @_fused_vit_head_kernel(%arg0: i32, %arg1: i32, %arg2: memref<2x16x64xbf16, #tpu.memory_space<vmem>>, %arg3: memref<64x32xbf16, #tpu.memory_space<vmem>>, %arg4: memref<1x32xf32, #tpu.memory_space<vmem>>, %arg5: memref<32x128xbf16, #tpu.memory_space<vmem>>, %arg6: memref<1x128xf32, #tpu.memory_space<vmem>>, %arg7: memref<2x128xf32, #tpu.memory_space<vmem>>, %arg8: memref<2x8x64xf32, #tpu.memory_space<vmem>>) attributes {dimension_semantics = [#tpu.dimension_semantics<parallel>, #tpu.dimension_semantics<arbitrary>], iteration_bounds = array<i64: 1, 1>, scalar_prefetch = 0 : i64, scratch_operands = 1 : i64, tpu.core_type = #tpu.core_type<tc>, window_params = [{transform_indices = @transform_0, window_bounds = array<i64: 2, 16, 64>}, {pipeline_mode = #tpu.pipeline_mode<synchronous>, transform_indices = @transform_1, window_bounds = array<i64: 64, 32>}, {pipeline_mode = #tpu.pipeline_mode<synchronous>, transform_indices = @transform_2, window_bounds = array<i64: 1, 32>}, {pipeline_mode = #tpu.pipeline_mode<synchronous>, transform_indices = @transform_3, window_bounds = array<i64: 32, 128>}, {pipeline_mode = #tpu.pipeline_mode<synchronous>, transform_indices = @transform_4, window_bounds = array<i64: 1, 128>}, {transform_indices = @transform_5, window_bounds = array<i64: 2, 128>}]} {
    %c0_i32 = arith.constant 0 : i32
    %0 = arith.cmpi eq, %arg1, %c0_i32 : i32
    %1 = arith.extui %0 : i1 to i32
    %c0_i32_0 = arith.constant 0 : i32
    %2 = arith.cmpi ne, %1, %c0_i32_0 : i32
    scf.if %2 {
      %cst = arith.constant 0.000000e+00 : f32
      %14 = vector.broadcast %cst : f32 to vector<2x8x64xf32>
      %c0_13 = arith.constant 0 : index
      %c0_14 = arith.constant 0 : index
      %c0_15 = arith.constant 0 : index
      %15 = vector.load %arg8[%c0_13, %c0_14, %c0_15] : memref<2x8x64xf32, #tpu.memory_space<vmem>>, vector<2x8x64xf32>
      tpu.vector_store %arg8[%c0_13, %c0_14, %c0_15], %14 {strides = array<i32>} : memref<2x8x64xf32, #tpu.memory_space<vmem>>, vector<2x8x64xf32>,
    } else {
    }
    %c0 = arith.constant 0 : index
    %c0_1 = arith.constant 0 : index
    %c0_2 = arith.constant 0 : index
    %3 = vector.load %arg2[%c0, %c0_1, %c0_2] : memref<2x16x64xbf16, #tpu.memory_space<vmem>>, vector<2x8x64xbf16>
    %4 = arith.extf %3 : vector<2x8x64xbf16> to vector<2x8x64xf32>
    %c0_3 = arith.constant 0 : index
    %c8 = arith.constant 8 : index
    %c0_4 = arith.constant 0 : index
    %5 = vector.load %arg2[%c0_3, %c8, %c0_4] : memref<2x16x64xbf16, #tpu.memory_space<vmem>>, vector<2x8x64xbf16>
    %6 = arith.extf %5 : vector<2x8x64xbf16> to vector<2x8x64xf32>
    %7 = arith.addf %4, %6 : vector<2x8x64xf32>
    %c0_5 = arith.constant 0 : index
    %c0_6 = arith.constant 0 : index
    %c0_7 = arith.constant 0 : index
    %8 = vector.load %arg8[%c0_5, %c0_6, %c0_7] : memref<2x8x64xf32, #tpu.memory_space<vmem>>, vector<2x8x64xf32>
    %9 = arith.addf %8, %7 : vector<2x8x64xf32>
    %c0_8 = arith.constant 0 : index
    %c0_9 = arith.constant 0 : index
    %c0_10 = arith.constant 0 : index
    %10 = vector.load %arg8[%c0_8, %c0_9, %c0_10] : memref<2x8x64xf32, #tpu.memory_space<vmem>>, vector<2x8x64xf32>
    tpu.vector_store %arg8[%c0_8, %c0_9, %c0_10], %9 {strides = array<i32>} : memref<2x8x64xf32, #tpu.memory_space<vmem>>, vector<2x8x64xf32>,
    %c0_i32_11 = arith.constant 0 : i32
    %11 = arith.cmpi eq, %arg1, %c0_i32_11 : i32
    %12 = arith.extui %11 : i1 to i32
    %c0_i32_12 = arith.constant 0 : i32
    %13 = arith.cmpi ne, %12, %c0_i32_12 : i32
    scf.if %13 {
      %c0_13 = arith.constant 0 : index
      %c0_14 = arith.constant 0 : index
      %c0_15 = arith.constant 0 : index
      %14 = vector.load %arg8[%c0_13, %c0_14, %c0_15] : memref<2x8x64xf32, #tpu.memory_space<vmem>>, vector<2x8x64xf32>
      %cst = arith.constant dense<0.000000e+00> : vector<2x64xf32>
      %15 = vector.multi_reduction <add>, %14, %cst [1] : vector<2x8x64xf32> to vector<2x64xf32>
      %cst_16 = arith.constant 6.250000e-02 : f32
      %16 = vector.broadcast %cst_16 : f32 to vector<2x64xf32>
      %17 = arith.mulf %15, %16 : vector<2x64xf32>
      %18 = arith.truncf %17 : vector<2x64xf32> to vector<2x64xbf16>
      %c0_17 = arith.constant 0 : index
      %c0_18 = arith.constant 0 : index
      %19 = vector.load %arg3[%c0_17, %c0_18] : memref<64x32xbf16, #tpu.memory_space<vmem>>, vector<64x32xbf16>
      %cst_19 = arith.constant dense<0.000000e+00> : vector<2x32xf32>
      %20 = tpu.matmul %18, %19, %cst_19 {dimension_numbers = #tpu.dot_dimension_numbers<[1], [0], [0], [1], [0, 0, 1, 1], [], []>} : vector<2x64xbf16>, vector<64x32xbf16>, vector<2x32xf32> -> vector<2x32xf32>
      %c0_20 = arith.constant 0 : index
      %c0_21 = arith.constant 0 : index
      %21 = vector.load %arg4[%c0_20, %c0_21] : memref<1x32xf32, #tpu.memory_space<vmem>>, vector<1x32xf32>
      %22 = vector.broadcast %21 : vector<1x32xf32> to vector<2x32xf32>
      %23 = arith.addf %20, %22 : vector<2x32xf32>
      %24 = arith.truncf %23 : vector<2x32xf32> to vector<2x32xbf16>
      %c0_22 = arith.constant 0 : index
      %c0_23 = arith.constant 0 : index
      %25 = vector.load %arg5[%c0_22, %c0_23] : memref<32x128xbf16, #tpu.memory_space<vmem>>, vector<32x128xbf16>
      %cst_24 = arith.constant dense<0.000000e+00> : vector<2x128xf32>
      %26 = tpu.matmul %24, %25, %cst_24 {dimension_numbers = #tpu.dot_dimension_numbers<[1], [0], [0], [1], [0, 0, 1, 1], [], []>} : vector<2x32xbf16>, vector<32x128xbf16>, vector<2x128xf32> -> vector<2x128xf32>
      %c0_25 = arith.constant 0 : index
      %c0_26 = arith.constant 0 : index
      %27 = vector.load %arg6[%c0_25, %c0_26] : memref<1x128xf32, #tpu.memory_space<vmem>>, vector<1x128xf32>
      %28 = vector.broadcast %27 : vector<1x128xf32> to vector<2x128xf32>
      %29 = arith.addf %26, %28 : vector<2x128xf32>
      %c0_27 = arith.constant 0 : index
      %c0_28 = arith.constant 0 : index
      %30 = vector.load %arg7[%c0_27, %c0_28] : memref<2x128xf32, #tpu.memory_space<vmem>>, vector<2x128xf32>
      tpu.vector_store %arg7[%c0_27, %c0_28], %29 {strides = array<i32>} : memref<2x128xf32, #tpu.memory_space<vmem>>, vector<2x128xf32>,
    } else {
    }
    return
  }
  func.func @transform_0(%arg0: i32, %arg1: i32) -> (i32, i32, i32) {
    %c0_i32 = arith.constant 0 : i32
    %c0_i32_0 = arith.constant 0 : i32
    return %arg0, %arg1, %c0_i32 : i32, i32, i32
  }
  func.func @transform_1(%arg0: i32, %arg1: i32) -> (i32, i32) {
    %c0_i32 = arith.constant 0 : i32
    %c0_i32_0 = arith.constant 0 : i32
    %c0_i32_1 = arith.constant 0 : i32
    return %c0_i32, %c0_i32_0 : i32, i32
  }
  func.func @transform_2(%arg0: i32, %arg1: i32) -> (i32, i32) {
    %c0_i32 = arith.constant 0 : i32
    %c0_i32_0 = arith.constant 0 : i32
    %c0_i32_1 = arith.constant 0 : i32
    return %c0_i32, %c0_i32_0 : i32, i32
  }
  func.func @transform_3(%arg0: i32, %arg1: i32) -> (i32, i32) {
    %c0_i32 = arith.constant 0 : i32
    %c0_i32_0 = arith.constant 0 : i32
    %c0_i32_1 = arith.constant 0 : i32
    return %c0_i32, %c0_i32_0 : i32, i32
  }
  func.func @transform_4(%arg0: i32, %arg1: i32) -> (i32, i32) {
    %c0_i32 = arith.constant 0 : i32
    %c0_i32_0 = arith.constant 0 : i32
    %c0_i32_1 = arith.constant 0 : i32
    return %c0_i32, %c0_i32_0 : i32, i32
  }
  func.func @transform_5(%arg0: i32, %arg1: i32) -> (i32, i32) {
    %c0_i32 = arith.constant 0 : i32
    %c0_i32_0 = arith.constant 0 : i32
    return %arg0, %c0_i32 : i32, i32
  }
}

</mosaic_0001>

<llo_original>
// kernel: tpu_custom_call.1
$region0: #{tpu_custom_call.1}
  #allocation0 [shape = 'u32[]', space=smem, size = 0x4, offset = 0x4, fixed_abs, tag = 'smem constant byte address 0x4 - core index']
  #allocation1 [shape = 'u32[144,128]{1,0:T(1,128)}', space=vmem, size = 0x12000, scoped, tag = 'internal scratch']
  #allocation2 [shape = 'f32[2,8,64]{2,1,0:T(8,128)}', space=vmem, size = 0x2000, scoped, tag = 'scratch operand']
  %s0 = inlined_call_operand.vmem [shape: bf16[2,16,64], index: 0, kind: input, shape index: {}]
  %s1 = inlined_call_operand.vmem [shape: bf16[64,32], index: 1, kind: input, shape index: {}]
  %s2 = inlined_call_operand.vmem [shape: f32[1,32], index: 2, kind: input, shape index: {}]
  %s3 = inlined_call_operand.vmem [shape: bf16[32,128], index: 3, kind: input, shape index: {}]
  %s4 = inlined_call_operand.vmem [shape: f32[1,128], index: 4, kind: input, shape index: {}]
  %s5 = inlined_call_operand.hbm [shape: f32[2,128], index: 5, kind: output, shape index: {}]
  %s6 = sld [smem:[#allocation0]]
  $region38: #{tpu_custom_call.1} parent=0
    _
  %s8 = ssub.s32 1, %s6
  %s9 = scalar_select 0, %s8, %s6
  $region1: #{tpu_custom_call.1} parent=0
    #allocation3 [shape = 'u8[1024]{0}', space=vmem, size = 0x400, scoped, tag = 'output window, operand 0, single buffered']
    #allocation4 [shape = 's32[1]{0}', space=sflag, size = 0x4, scoped, tag = 'scoped memory for tpu_custom_call.1']
    %10 = vsyncpa [#allocation4], 0
    // Predicated region
    $region2: #{tpu_custom_call.1} parent=1 // pred_check
      _
    $region3: #{tpu_custom_call.1} parent=1 // pred_check_branch
      %12 = sbr.rel (0) target = $region5
    $region4: #{tpu_custom_call.1} parent=1 // pred_region
      _
    $region5: #{tpu_custom_call.1} parent=1 // pred_fallthru
      _
    // Predicated region
    $region6: #{tpu_custom_call.1} parent=1 // pred_check
      _
    $region7: #{tpu_custom_call.1} parent=1 // pred_check_branch
      %14 = sbr.rel (0) target = $region9
    $region8: #{tpu_custom_call.1} parent=1 // pred_region
      _
    $region9: #{tpu_custom_call.1} parent=1 // pred_fallthru
      _
    // Predicated region
    $region10: #{tpu_custom_call.1} parent=1 // pred_check
      _
    $region11: #{tpu_custom_call.1} parent=1 // pred_check_branch
      %16 = sbr.rel (0) target = $region13
    $region12: #{tpu_custom_call.1} parent=1 // pred_region
      _
    $region13: #{tpu_custom_call.1} parent=1 // pred_fallthru
      _
    // Predicated region
    $region14: #{tpu_custom_call.1} parent=1 // pred_check
      _
    $region15: #{tpu_custom_call.1} parent=1 // pred_check_branch
      %18 = sbr.rel (0) target = $region17
    $region16: #{tpu_custom_call.1} parent=1 // pred_region
      _
    $region17: #{tpu_custom_call.1} parent=1 // pred_fallthru
      _
    // Predicated region
    $region18: #{tpu_custom_call.1} parent=1 // pred_check
      _
    $region19: #{tpu_custom_call.1} parent=1 // pred_check_branch
      %20 = sbr.rel (0) target = $region21
    $region20: #{tpu_custom_call.1} parent=1 // pred_region
      _
    $region21: #{tpu_custom_call.1} parent=1 // pred_fallthru
      _
    %p22 = scmp.eq.s32.totalorder 0, 0
    // Predicated region
    $region22: #{tpu_custom_call.1} parent=1 // pred_check
      %p23 = pneg %p22
    $region23: #{tpu_custom_call.1} parent=1 // pred_check_branch
      %25 = sbr.rel (%p23) target = $region25
    $region24: #{tpu_custom_call.1} parent=1 // pred_region
      %vm26 = vcmask 523264
      %27 = vst.msk [vmem:[#allocation2] sm:$0xff] %vm26, 0.0
      %28 = vst.msk [vmem:[#allocation2 + $0x8] sm:$0xff] %vm26, 0.0
    $region25: #{tpu_custom_call.1} parent=1 // pred_fallthru
      _
    %v29 = vld [vmem:[%s0] sm:$0xf]
    %v30 = vld [vmem:[%s0 + $0x8] sm:$0xf]
    %v31 = vunpack.c.l.bf16 %v29
    %v32 = vunpack.c.l.bf16 %v30
    %v33 = vld [vmem:[%s0 + $0x4] sm:$0xf]
    %v34 = vld [vmem:[%s0 + $0xc] sm:$0xf]
    %v35 = vunpack.c.l.bf16 %v33
    %v36 = vunpack.c.l.bf16 %v34
    %v37 = vadd.f32 %v31, %v35
    %v38 = vadd.f32 %v32, %v36
    %v39 = vld [vmem:[#allocation2] sm:$0xff]
    %v40 = vld [vmem:[#allocation2 + $0x8] sm:$0xff]
    %v41 = vadd.f32 %v39, %v37
    %v42 = vadd.f32 %v40, %v38
    %vm43 = vcmask 523264
    %44 = vst.msk [vmem:[#allocation2] sm:$0xff] %vm43, %v41
    %45 = vst.msk [vmem:[#allocation2 + $0x8] sm:$0xff] %vm43, %v42
    // Predicated region
    $region26: #{tpu_custom_call.1} parent=1 // pred_check
      %p46 = pneg %p22
    $region27: #{tpu_custom_call.1} parent=1 // pred_check_branch
      %48 = sbr.rel (%p46) target = $region29
    $region28: #{tpu_custom_call.1} parent=1 // pred_region
      %v49 = vld [vmem:[#allocation2] sm:$0xff]
      %v50 = vld [vmem:[#allocation2 + $0x8] sm:$0xff]
      %v51 = vsel %vm43, %v49, 0.0
      %v52 = vrot.slane %v51, 4
      %v53 = vadd.f32 %v51, %v52
      %v54 = vrot.slane %v53, 2
      %v55 = vadd.f32 %v53, %v54
      %v56 = vrot.slane %v55, 1
      %v57 = vadd.f32 %v55, %v56
      %v58 = vsel %vm43, %v50, 0.0
      %v59 = vrot.slane %v58, 4
      %v60 = vadd.f32 %v58, %v59
      %v61 = vrot.slane %v60, 2
      %v62 = vadd.f32 %v60, %v61
      %v63 = vrot.slane %v62, 1
      %v64 = vadd.f32 %v62, %v63
      %v65 = vmul.f32 %v57, 0.0625
      %v66 = vmul.f32 %v64, 0.0625
      %v67 = vpack.c.bf16 %v65, %v65
      %v68 = vpack.c.bf16 %v66, %v66
      %v69 = vld [vmem:[%s1] sm:$0xf]
      %v70 = vld [vmem:[%s1 + $0x4] sm:$0xf]
      %v71 = vld [vmem:[%s1 + $0x8] sm:$0xf]
      %v72 = vld [vmem:[%s1 + $0xc] sm:$0xf]
      %v73 = vld [vmem:[%s1 + $0x10] sm:$0xf]
      %v74 = vld [vmem:[%s1 + $0x14] sm:$0xf]
      %v75 = vld [vmem:[%s1 + $0x18] sm:$0xf]
      %v76 = vld [vmem:[%s1 + $0x1c] sm:$0xf]
      %v77 = vld [vmem:[%s2] sm:$0x1]
      %v79 = vlaneseq
      %v80 = vshrl.u32 %v79, 7
      %v81 = vsub.s32 0, %v80
      %v82 = vrot.slane %v77, %v81
      %v86 = vunpack.c.l.b16 %v67
      %v87 = vunpack.c.l.b16 %v68
      %vm88 = vcmask 1041409
      %v89 = vsel %vm88, %v87, %v86
      %v90 = vpack.c.b16 %v89, %v89
      %v99 = vunpack.c.l.b16 %v69
      %v100 = vunpack.c.l.b16 %v70
      %v101 = vunpack.c.l.b16 %v71
      %v102 = vunpack.c.l.b16 %v72
      %v103 = vunpack.c.l.b16 %v73
      %v104 = vunpack.c.l.b16 %v74
      %v105 = vunpack.c.l.b16 %v75
      %v106 = vunpack.c.l.b16 %v76
      %v107 = vpack.c.b16 %v100, %v99
      %v108 = vpack.c.b16 %v102, %v101
      %v109 = vpack.c.b16 %v104, %v103
      %v110 = vpack.c.b16 %v106, %v105
      %v116 = vsel %vm43, %v90, 0
      %118 = vmatprep.subr.bf16.mxu0 0
      %119 = vmatpush1.bf16.msra.mxu0 %v107
      %120 = vmatprep.subr.bf16.mxu0 0
      %121 = vmatpush1.bf16.msra.mxu0 %v108
      %122 = vmatprep.subr.bf16.mxu0 0
      %123 = vmatpush1.bf16.msra.mxu0 %v109
      %124 = vmatprep.subr.bf16.mxu0 0
      %125 = vmatpush1.bf16.msra.mxu0 %v110
      %126 = vmatprep.subr.bf16.mxu0 0
      %127 = vmatpush1.bf16.msra.mxu0 0
      %128 = vmatprep.subr.bf16.mxu0 0
      %129 = vmatpush1.bf16.msra.mxu0 0
      %130 = vmatprep.subr.bf16.mxu0 0
      %131 = vmatpush1.bf16.msra.mxu0 0
      %132 = vmatprep.subr.bf16.mxu0 0
      %133 = vmatpush1.bf16.msra.mxu0 0
      %134 = vmatprep.subr.bf16.mxu0 0
      %135 = vmatpush1.bf16.msra.mxu0 0
      %136 = vmatprep.subr.bf16.mxu0 0
      %137 = vmatpush1.bf16.msra.mxu0 0
      %138 = vmatprep.subr.bf16.mxu0 0
      %139 = vmatpush1.bf16.msra.mxu0 0
      %140 = vmatprep.subr.bf16.mxu0 0
      %141 = vmatpush1.bf16.msra.mxu0 0
      %142 = vmatprep.subr.bf16.mxu0 0
      %143 = vmatpush1.bf16.msra.mxu0 0
      %144 = vmatprep.subr.bf16.mxu0 0
      %145 = vmatpush1.bf16.msra.mxu0 0
      %146 = vmatprep.subr.bf16.mxu0 0
      %147 = vmatpush1.bf16.msra.mxu0 0
      %148 = vmatprep.subr.bf16.mxu0 0
      %149 = vmatpush1.bf16.msra.mxu0 0
      %150 = vmatprep.mubr.bf16.mxu0 0
      %151 = vmatmul.mubr.bf16.gmra.mrb[0].mxu0 %v116
      %v152 = vpop.f32.mrb[0].mxu0
      %v153 = vadd.f32 %v82, %v152
      %v154 = vpop.f32.mrb[0].mxu0
      %v155 = vpop.f32.mrb[0].mxu0
      %v156 = vpop.f32.mrb[0].mxu0
      %157 = vdwg.mxu0
      %v158 = vpack.c.bf16 %v153, %v153
      %v159 = vld [vmem:[%s3] sm:$0xf]
      %v160 = vld [vmem:[%s3 + $0x4] sm:$0xf]
      %v161 = vld [vmem:[%s3 + $0x8] sm:$0xf]
      %v162 = vld [vmem:[%s3 + $0xc] sm:$0xf]
      %v163 = vld [vmem:[%s4] sm:$0x1]
      %v165 = vlaneseq
      %v166 = vshrl.u32 %v165, 7
      %v167 = vsub.s32 0, %v166
      %v168 = vrot.slane %v163, %v167
      %v174 = vunpack.c.l.b16 %v159
      %v175 = vunpack.c.l.b16 %v160
      %v176 = vunpack.c.l.b16 %v161
      %v177 = vunpack.c.l.b16 %v162
      %v178 = vpack.c.b16 %v175, %v174
      %v179 = vpack.c.b16 %v177, %v176
      %vm182 = vcmask 261120
      %v184 = vsel %vm182, %v158, 0
      %186 = vmatprep.subr.bf16.mxu0 0
      %187 = vmatpush1.bf16.msra.mxu0 %v178
      %188 = vmatprep.subr.bf16.mxu0 0
      %189 = vmatpush1.bf16.msra.mxu0 %v179
      %190 = vmatprep.subr.bf16.mxu0 0
      %191 = vmatpush1.bf16.msra.mxu0 0
      %192 = vmatprep.subr.bf16.mxu0 0
      %193 = vmatpush1.bf16.msra.mxu0 0
      %194 = vmatprep.subr.bf16.mxu0 0
      %195 = vmatpush1.bf16.msra.mxu0 0
      %196 = vmatprep.subr.bf16.mxu0 0
      %197 = vmatpush1.bf16.msra.mxu0 0
      %198 = vmatprep.subr.bf16.mxu0 0
      %199 = vmatpush1.bf16.msra.mxu0 0
      %200 = vmatprep.subr.bf16.mxu0 0
      %201 = vmatpush1.bf16.msra.mxu0 0
      %202 = vmatprep.subr.bf16.mxu0 0
      %203 = vmatpush1.bf16.msra.mxu0 0
      %204 = vmatprep.subr.bf16.mxu0 0
      %205 = vmatpush1.bf16.msra.mxu0 0
      %206 = vmatprep.subr.bf16.mxu0 0
      %207 = vmatpush1.bf16.msra.mxu0 0
      %208 = vmatprep.subr.bf16.mxu0 0
      %209 = vmatpush1.bf16.msra.mxu0 0
      %210 = vmatprep.subr.bf16.mxu0 0
      %211 = vmatpush1.bf16.msra.mxu0 0
      %212 = vmatprep.subr.bf16.mxu0 0
      %213 = vmatpush1.bf16.msra.mxu0 0
      %214 = vmatprep.subr.bf16.mxu0 0
      %215 = vmatpush1.bf16.msra.mxu0 0
      %216 = vmatprep.subr.bf16.mxu0 0
      %217 = vmatpush1.bf16.msra.mxu0 0
      %218 = vmatprep.mubr.bf16.mxu0 0
      %219 = vmatmul.mubr.bf16.gmra.mrb[0].mxu0 %v184
      %v220 = vpop.f32.mrb[0].mxu0
      %v221 = vadd.f32 %v168, %v220
      %v222 = vpop.f32.mrb[0].mxu0
      %v223 = vpop.f32.mrb[0].mxu0
      %v224 = vpop.f32.mrb[0].mxu0
      %225 = vdwg.mxu0
      %226 = vst [vmem:[#allocation3] sm:$0x3] %v221
    $region29: #{tpu_custom_call.1} parent=1 // pred_fallthru
      _
    // Predicated region
    $region30: #{tpu_custom_call.1} parent=1 // pred_check
      _
    $region31: #{tpu_custom_call.1} parent=1 // pred_check_branch
      %228 = sbr.rel (0) target = $region33
    $region32: #{tpu_custom_call.1} parent=1 // pred_region
      %s230 = ssub.s32 32, 32
      %231 = vsyncadd [#allocation4], %s230
      %s233 = sshll.u32 [#allocation3], 4
      %s234 = int_to_ptr.vmem [resolvable:$true] %s233
      %236 = dma.vmem_to_hbm [thread:$0]  %s234, 32, %s5, [#allocation4]
    $region33: #{tpu_custom_call.1} parent=1 // pred_fallthru
      _
    // Predicated region
    $region34: #{tpu_custom_call.1} parent=1 // pred_check
      _
    $region35: #{tpu_custom_call.1} parent=1 // pred_check_branch
      %238 = sbr.rel (0) target = $region37
    $region36: #{tpu_custom_call.1} parent=1 // pred_region
      %239 = dma.done [#allocation4], 32
    $region37: #{tpu_custom_call.1} parent=1 // pred_fallthru
      _
    %240 = vsyncpa [#allocation4], 1

</llo_original>
